<compile_context>
chip_gen: v7x
topology: tpu7x:2x2x1
jax: 0.10.0
libtpu: 0.0.40
codegen_flags: <defaults>
</compile_context>

<pallas_src>
import functools

import jax
import jax.numpy as jnp
from jax import lax
from jax.experimental import pallas as pl
from jax.experimental.pallas import tpu as pltpu


# Safe on v5e/v6e (128 MiB physical) and v7x (64 MiB physical); well above the
# actual working set of these kernels at realistic VAE shapes.
_VMEM_LIMIT = 48 * 1024 * 1024


def _choose_tile(n, target):
    """Largest multiple-of-16 divisor of n that is <= target (else n itself)."""
    if n <= target:
        return n
    t = (target // 16) * 16
    while t >= 16:
        if n % t == 0:
            return t
        t -= 16
    return n


# --------------------------------------------------------------------------
# pass 1: GroupNorm statistics -> per-channel scale / shift
# --------------------------------------------------------------------------
def _gn_stats_kernel(x_ref, gamma_ref, beta_ref, scale_ref, shift_ref,
                     sum_sc, sq_sc, *, hw, num_groups, eps):
    r = pl.program_id(1)

    @pl.when(r == 0)
    def _():
        sum_sc[...] = jnp.zeros(sum_sc.shape, jnp.float32)
        sq_sc[...] = jnp.zeros(sq_sc.shape, jnp.float32)

    xb = x_ref[0]                                              # (tr, C) f32
    sum_sc[...] += jnp.sum(xb, axis=0, keepdims=True)
    sq_sc[...] += jnp.sum(xb * xb, axis=0, keepdims=True)

    @pl.when(r == pl.num_programs(1) - 1)
    def _():
        c = xb.shape[1]
        g = num_groups
        cpg = c // g
        # One-hot channel<->group maps, built in-kernel (no HBM inputs, no
        # vector integer division).
        ch_idx = lax.broadcasted_iota(jnp.int32, (c, g), 0)
        grp_lo = lax.broadcasted_iota(jnp.int32, (c, g), 1) * cpg
        gmat = jnp.logical_and(ch_idx >= grp_lo,
                               ch_idx < grp_lo + cpg).astype(jnp.float32)
        ch_idx_t = lax.broadcasted_iota(jnp.int32, (g, c), 1)
        grp_lo_t = lax.broadcasted_iota(jnp.int32, (g, c), 0) * cpg
        gmat_t = jnp.logical_and(ch_idx_t >= grp_lo_t,
                                 ch_idx_t < grp_lo_t + cpg).astype(jnp.float32)

        n_elem = float(hw * cpg)
        grp_sum = jnp.dot(sum_sc[...], gmat,
                          preferred_element_type=jnp.float32)        # (1, G)
        grp_sqsum = jnp.dot(sq_sc[...], gmat,
                            preferred_element_type=jnp.float32)      # (1, G)
        grp_mean = grp_sum / n_elem
        # clamp guards against tiny negative values from E[x^2]-E[x]^2 cancel
        grp_var = jnp.maximum(grp_sqsum / n_elem - grp_mean * grp_mean, 0.0)
        grp_inv = lax.rsqrt(grp_var + eps)
        ch_mean = jnp.dot(grp_mean, gmat_t,
                          preferred_element_type=jnp.float32)        # (1, C)
        ch_inv = jnp.dot(grp_inv, gmat_t,
                         preferred_element_type=jnp.float32)         # (1, C)
        scl = ch_inv * gamma_ref[...]                 # GroupNorm affine folded
        scale_ref[0] = scl
        shift_ref[0] = beta_ref[...] - ch_mean * scl


# --------------------------------------------------------------------------
# pass 2: normalize + fused QKV projection (bf16 MXU, f32 accumulate)
# --------------------------------------------------------------------------
def _qkv_kernel(x_ref, scale_ref, shift_ref, wqkv_ref, bqkv_ref,
                q_ref, k_ref, v_ref):
    x = x_ref[0]                                               # (tr, C) f32
    c = x.shape[1]
    h = x * scale_ref[0] + shift_ref[0]          # 2 vector ops per element
    qkv = jnp.dot(h.astype(jnp.bfloat16), wqkv_ref[...],
                  preferred_element_type=jnp.float32) + bqkv_ref[...]
    q_ref[0] = qkv[:, :c].astype(jnp.bfloat16)   # 1/sqrt(C) already folded in
    k_ref[0] = qkv[:, c:2 * c].astype(jnp.bfloat16)
    v_ref[0] = qkv[:, 2 * c:].astype(jnp.bfloat16)


# --------------------------------------------------------------------------
# pass 3: flash attention (online softmax) + proj_out + residual
# --------------------------------------------------------------------------
def _flash_attn_kernel(x_ref, q_ref, k_ref, v_ref, wp_ref, bp_ref, out_ref,
                       m_sc, l_sc, acc_sc):
    ki = pl.program_id(2)

    @pl.when(ki == 0)
    def _():
        m_sc[...] = jnp.full(m_sc.shape, -jnp.inf, jnp.float32)
        l_sc[...] = jnp.zeros(l_sc.shape, jnp.float32)
        acc_sc[...] = jnp.zeros(acc_sc.shape, jnp.float32)

    q = q_ref[0]                                               # (tq, C) bf16
    k = k_ref[0]                                               # (tk, C) bf16
    s = lax.dot_general(q, k, (((1,), (1,)), ((), ())),
                        preferred_element_type=jnp.float32)    # (tq, tk) f32
    m_prev = m_sc[...]
    m_new = jnp.maximum(m_prev, jnp.max(s, axis=-1, keepdims=True))
    alpha = jnp.exp(m_prev - m_new)
    p = jnp.exp(s - m_new)
    l_sc[...] = alpha * l_sc[...] + jnp.sum(p, axis=-1, keepdims=True)
    acc_sc[...] = alpha * acc_sc[...] + jnp.dot(
        p.astype(jnp.bfloat16), v_ref[0], preferred_element_type=jnp.float32)
    m_sc[...] = m_new

    @pl.when(ki == pl.num_programs(2) - 1)
    def _():
        o = acc_sc[...] * pl.reciprocal(l_sc[...], approx=True)   # (tq, C) f32
        proj = jnp.dot(o.astype(jnp.bfloat16), wp_ref[...],
                       preferred_element_type=jnp.float32) + bp_ref[...]
        out_ref[0] = x_ref[0] + proj


# --------------------------------------------------------------------------
# wrapper
# --------------------------------------------------------------------------
def attn_block_pallas(x_nchw, params, num_groups=32):
    """x_nchw: (B, C, H, W) float32. params: dict of weights (see init)."""
    b, c, h, w = x_nchw.shape
    hw = h * w
    g = num_groups
    assert c % g == 0

    # NCHW -> (B, HW, C)
    x_tok = jnp.transpose(x_nchw.astype(jnp.float32),
                          (0, 2, 3, 1)).reshape(b, hw, c)

    gamma = params["gn_gamma"].reshape(1, c).astype(jnp.float32)
    beta = params["gn_beta"].reshape(1, c).astype(jnp.float32)

    # 1x1 convs == per-token linears. Pre-transpose so y = h @ W + b, fuse
    # q/k/v into one (C, 3C) matrix, fold 1/sqrt(C) into the q slice, and
    # cast weight matrices to bf16 (MXU operands, half the DMA bytes).
    attn_scale = 1.0 / float(c) ** 0.5
    wqkv = jnp.concatenate(
        [params["wq"].T * attn_scale, params["wk"].T, params["wv"].T],
        axis=1).astype(jnp.bfloat16)                                 # (C, 3C)
    bqkv = jnp.concatenate(
        [params["bq"] * attn_scale, params["bk"], params["bv"]],
        axis=0).reshape(1, 3 * c).astype(jnp.float32)
    wp = params["wp"].T.astype(jnp.bfloat16)                         # (C, C)
    bp = params["bp"].reshape(1, c).astype(jnp.float32)

    tr = _choose_tile(hw, 512)      # row tile for stats / qkv passes
    tq = _choose_tile(hw, 256)      # query tile (sized for v7x 64 MiB VMEM)
    tk = _choose_tile(hw, 512)      # kv tile
    nr, nq, nk = hw // tr, hw // tq, hw // tk

    # ---- pass 1: GroupNorm stats -> per-channel scale/shift ----
    scale, shift = pl.pallas_call(
        functools.partial(_gn_stats_kernel, hw=hw, num_groups=g, eps=1e-6),
        out_shape=(jax.ShapeDtypeStruct((b, 1, c), jnp.float32),
                   jax.ShapeDtypeStruct((b, 1, c), jnp.float32)),
        grid_spec=pltpu.PrefetchScalarGridSpec(
            num_scalar_prefetch=0,
            grid=(b, nr),
            in_specs=[
                pl.BlockSpec((1, tr, c), lambda i, r: (i, r, 0)),
                pl.BlockSpec((1, c), lambda i, r: (0, 0)),
                pl.BlockSpec((1, c), lambda i, r: (0, 0)),
            ],
            out_specs=[
                pl.BlockSpec((1, 1, c), lambda i, r: (i, 0, 0)),
                pl.BlockSpec((1, 1, c), lambda i, r: (i, 0, 0)),
            ],
            scratch_shapes=[pltpu.VMEM((1, c), jnp.float32),
                            pltpu.VMEM((1, c), jnp.float32)],
        ),
        compiler_params=pltpu.CompilerParams(
            dimension_semantics=("parallel", "arbitrary"),
            vmem_limit_bytes=_VMEM_LIMIT),
    )(x_tok, gamma, beta)

    # ---- pass 2: normalize + fused QKV projection (bf16 outputs) ----
    q, k, v = pl.pallas_call(
        _qkv_kernel,
        out_shape=(jax.ShapeDtypeStruct((b, hw, c), jnp.bfloat16),) * 3,
        grid_spec=pltpu.PrefetchScalarGridSpec(
            num_scalar_prefetch=0,
            grid=(b, nr),
            in_specs=[
                pl.BlockSpec((1, tr, c), lambda i, r: (i, r, 0)),   # x
                pl.BlockSpec((1, 1, c), lambda i, r: (i, 0, 0)),    # scale
                pl.BlockSpec((1, 1, c), lambda i, r: (i, 0, 0)),    # shift
                pl.BlockSpec((c, 3 * c), lambda i, r: (0, 0)),      # wqkv
                pl.BlockSpec((1, 3 * c), lambda i, r: (0, 0)),      # bqkv
            ],
            out_specs=[pl.BlockSpec((1, tr, c), lambda i, r: (i, r, 0))] * 3,
        ),
        compiler_params=pltpu.CompilerParams(
            dimension_semantics=("parallel", "parallel"),
            vmem_limit_bytes=_VMEM_LIMIT),
    )(x_tok, scale, shift, wqkv, bqkv)

    # ---- pass 3: flash attention + proj_out + residual ----
    out_tok = pl.pallas_call(
        _flash_attn_kernel,
        out_shape=jax.ShapeDtypeStruct((b, hw, c), jnp.float32),
        grid_spec=pltpu.PrefetchScalarGridSpec(
            num_scalar_prefetch=0,
            grid=(b, nq, nk),
            in_specs=[
                pl.BlockSpec((1, tq, c), lambda i, qi, ki: (i, qi, 0)),  # x
                pl.BlockSpec((1, tq, c), lambda i, qi, ki: (i, qi, 0)),  # q
                pl.BlockSpec((1, tk, c), lambda i, qi, ki: (i, ki, 0)),  # k
                pl.BlockSpec((1, tk, c), lambda i, qi, ki: (i, ki, 0)),  # v
                pl.BlockSpec((c, c), lambda i, qi, ki: (0, 0)),          # wp
                pl.BlockSpec((1, c), lambda i, qi, ki: (0, 0)),          # bp
            ],
            out_specs=pl.BlockSpec((1, tq, c), lambda i, qi, ki: (i, qi, 0)),
            scratch_shapes=[pltpu.VMEM((tq, 1), jnp.float32),   # m
                            pltpu.VMEM((tq, 1), jnp.float32),   # l
                            pltpu.VMEM((tq, c), jnp.float32)],  # acc
        ),
        compiler_params=pltpu.CompilerParams(
            dimension_semantics=("parallel", "parallel", "arbitrary"),
            vmem_limit_bytes=_VMEM_LIMIT),
    )(x_tok, q, k, v, wp, bp)

    # (B, HW, C) -> NCHW
    return jnp.transpose(out_tok.reshape(b, h, w, c), (0, 3, 1, 2))


# --------------------------------------------------------------------------
# pure-JAX reference (f32 everywhere) for the correctness check
# --------------------------------------------------------------------------
def attn_block_ref(x_nchw, params, num_groups=32):
    b, c, h, w = x_nchw.shape
    g = num_groups
    x = x_nchw.astype(jnp.float32)
    xg = x.reshape(b, g, c // g, h, w)
    mean = xg.mean(axis=(2, 3, 4), keepdims=True)
    var = xg.var(axis=(2, 3, 4), keepdims=True)
    hn = ((xg - mean) / jnp.sqrt(var + 1e-6)).reshape(b, c, h, w)
    hn = hn * params["gn_gamma"][None, :, None, None] + \
         params["gn_beta"][None, :, None, None]

    def conv1x1(t, wc, bc):
        return jnp.einsum("bchw,oc->bohw", t, wc) + bc[None, :, None, None]

    q = conv1x1(hn, params["wq"], params["bq"])
    k = conv1x1(hn, params["wk"], params["bk"])
    v = conv1x1(hn, params["wv"], params["bv"])

    def tok(t):
        return jnp.transpose(t, (0, 2, 3, 1)).reshape(b, h * w, c)

    qt, kt, vt = tok(q), tok(k), tok(v)
    logits = jnp.einsum("bqc,bkc->bqk", qt, kt) / jnp.sqrt(float(c))
    p = jax.nn.softmax(logits, axis=-1)
    a = jnp.einsum("bqk,bkc->bqc", p, vt)
    a = jnp.transpose(a.reshape(b, h, w, c), (0, 3, 1, 2))
    proj = conv1x1(a, params["wp"], params["bp"])
    return x + proj


def init_params(key, c):
    ks = jax.random.split(key, 8)
    s = 1.0 / (c ** 0.5)
    return {
        "gn_gamma": jnp.ones((c,), jnp.float32),
        "gn_beta": jnp.zeros((c,), jnp.float32),
        "wq": jax.random.normal(ks[0], (c, c), jnp.float32) * s,
        "bq": jax.random.normal(ks[1], (c,), jnp.float32) * 0.01,
        "wk": jax.random.normal(ks[2], (c, c), jnp.float32) * s,
        "bk": jax.random.normal(ks[3], (c,), jnp.float32) * 0.01,
        "wv": jax.random.normal(ks[4], (c, c), jnp.float32) * s,
        "bv": jax.random.normal(ks[5], (c,), jnp.float32) * 0.01,
        "wp": jax.random.normal(ks[6], (c, c), jnp.float32) * s,
        "bp": jax.random.normal(ks[7], (c,), jnp.float32) * 0.01,
    }


if __name__ == "__main__":
    key = jax.random.PRNGKey(0)
    kx, kp, kx2 = jax.random.split(key, 3)

    C = 64                        # must be divisible by 32 (GroupNorm groups)
    params = init_params(kp, C)

    # config 1: tiny shape (single tile along every axis)
    # config 2: larger spatial so the multi-tile flash path is exercised
    configs = [
        (jax.random.normal(kx, (2, C, 8, 8), jnp.float32)),
        (jax.random.normal(kx2, (2, C, 32, 32), jnp.float32)),
    ]

    for x in configs:
        out = attn_block_pallas(x, params)
        out = jax.block_until_ready(out)
        ref = attn_block_ref(x, params)
        assert out.shape == x.shape and out.dtype == jnp.float32
        # bf16 MXU operands (f32 accumulation) -> looser tolerance than pure f32
        assert jnp.allclose(out, ref, atol=5e-2, rtol=5e-2), \
            f"shape {x.shape}: max abs err {jnp.max(jnp.abs(out - ref))}"

    print("KERNEL_OK")
</pallas_src>

<mosaic_0001>
module attributes {stable_mosaic.version = 11 : i64} {
  func.func @_gn_stats_kernel(%arg0: i32, %arg1: i32, %arg2: memref<1x64x64xf32, #tpu.memory_space<vmem>>, %arg3: memref<1x64xf32, #tpu.memory_space<vmem>>, %arg4: memref<1x64xf32, #tpu.memory_space<vmem>>, %arg5: memref<1x1x64xf32, #tpu.memory_space<vmem>>, %arg6: memref<1x1x64xf32, #tpu.memory_space<vmem>>, %arg7: memref<1x64xf32, #tpu.memory_space<vmem>>, %arg8: memref<1x64xf32, #tpu.memory_space<vmem>>) attributes {dimension_semantics = [#tpu.dimension_semantics<parallel>, #tpu.dimension_semantics<arbitrary>], iteration_bounds = array<i64: 2, 1>, scalar_prefetch = 0 : i64, scratch_operands = 2 : i64, tpu.core_type = #tpu.core_type<tc>, window_params = [{transform_indices = @transform_0, window_bounds = array<i64: 1, 64, 64>}, {pipeline_mode = #tpu.pipeline_mode<synchronous>, transform_indices = @transform_1, window_bounds = array<i64: 1, 64>}, {pipeline_mode = #tpu.pipeline_mode<synchronous>, transform_indices = @transform_2, window_bounds = array<i64: 1, 64>}, {transform_indices = @transform_3, window_bounds = array<i64: 1, 1, 64>}, {transform_indices = @transform_4, window_bounds = array<i64: 1, 1, 64>}]} {
    %c0_i32 = arith.constant 0 : i32
    %0 = arith.cmpi eq, %arg1, %c0_i32 : i32
    %1 = arith.extui %0 : i1 to i32
    %c0_i32_0 = arith.constant 0 : i32
    %2 = arith.cmpi ne, %1, %c0_i32_0 : i32
    scf.if %2 {
      %cst_14 = arith.constant 0.000000e+00 : f32
      %19 = vector.broadcast %cst_14 : f32 to vector<1x64xf32>
      %c0_15 = arith.constant 0 : index
      %c0_16 = arith.constant 0 : index
      %20 = vector.load %arg7[%c0_15, %c0_16] : memref<1x64xf32, #tpu.memory_space<vmem>>, vector<1x64xf32>
      tpu.vector_store %arg7[%c0_15, %c0_16], %19 {strides = array<i32>} : memref<1x64xf32, #tpu.memory_space<vmem>>, vector<1x64xf32>,
      %cst_17 = arith.constant 0.000000e+00 : f32
      %21 = vector.broadcast %cst_17 : f32 to vector<1x64xf32>
      %c0_18 = arith.constant 0 : index
      %c0_19 = arith.constant 0 : index
      %22 = vector.load %arg8[%c0_18, %c0_19] : memref<1x64xf32, #tpu.memory_space<vmem>>, vector<1x64xf32>
      tpu.vector_store %arg8[%c0_18, %c0_19], %21 {strides = array<i32>} : memref<1x64xf32, #tpu.memory_space<vmem>>, vector<1x64xf32>,
    } else {
    }
    %c0 = arith.constant 0 : index
    %c0_1 = arith.constant 0 : index
    %c0_2 = arith.constant 0 : index
    %3 = vector.load %arg2[%c0, %c0_1, %c0_2] : memref<1x64x64xf32, #tpu.memory_space<vmem>>, vector<1x64x64xf32>
    %4 = vector.shape_cast %3 : vector<1x64x64xf32> to vector<64x64xf32>
    %c0_3 = arith.constant 0 : index
    %c0_4 = arith.constant 0 : index
    %5 = vector.load %arg7[%c0_3, %c0_4] : memref<1x64xf32, #tpu.memory_space<vmem>>, vector<1x64xf32>
    %cst = arith.constant dense<0.000000e+00> : vector<64xf32>
    %6 = vector.multi_reduction <add>, %4, %cst [0] : vector<64x64xf32> to vector<64xf32>
    %7 = vector.shape_cast %6 : vector<64xf32> to vector<1x64xf32>
    %8 = arith.addf %5, %7 : vector<1x64xf32>
    %c0_5 = arith.constant 0 : index
    %c0_6 = arith.constant 0 : index
    %9 = vector.load %arg7[%c0_5, %c0_6] : memref<1x64xf32, #tpu.memory_space<vmem>>, vector<1x64xf32>
    tpu.vector_store %arg7[%c0_5, %c0_6], %8 {strides = array<i32>} : memref<1x64xf32, #tpu.memory_space<vmem>>, vector<1x64xf32>,
    %c0_7 = arith.constant 0 : index
    %c0_8 = arith.constant 0 : index
    %10 = vector.load %arg8[%c0_7, %c0_8] : memref<1x64xf32, #tpu.memory_space<vmem>>, vector<1x64xf32>
    %11 = arith.mulf %4, %4 : vector<64x64xf32>
    %cst_9 = arith.constant dense<0.000000e+00> : vector<64xf32>
    %12 = vector.multi_reduction <add>, %11, %cst_9 [0] : vector<64x64xf32> to vector<64xf32>
    %13 = vector.shape_cast %12 : vector<64xf32> to vector<1x64xf32>
    %14 = arith.addf %10, %13 : vector<1x64xf32>
    %c0_10 = arith.constant 0 : index
    %c0_11 = arith.constant 0 : index
    %15 = vector.load %arg8[%c0_10, %c0_11] : memref<1x64xf32, #tpu.memory_space<vmem>>, vector<1x64xf32>
    tpu.vector_store %arg8[%c0_10, %c0_11], %14 {strides = array<i32>} : memref<1x64xf32, #tpu.memory_space<vmem>>, vector<1x64xf32>,
    %c0_i32_12 = arith.constant 0 : i32
    %16 = arith.cmpi eq, %arg1, %c0_i32_12 : i32
    %17 = arith.extui %16 : i1 to i32
    %c0_i32_13 = arith.constant 0 : i32
    %18 = arith.cmpi ne, %17, %c0_i32_13 : i32
    scf.if %18 {
      %19 = tpu.iota {dimensions = array<i32: 0>} : vector<64x32xi32>
      %20 = tpu.iota {dimensions = array<i32: 1>} : vector<64x32xi32>
      %c2_i32 = arith.constant 2 : i32
      %21 = vector.broadcast %c2_i32 : i32 to vector<64x32xi32>
      %22 = arith.muli %20, %21 : vector<64x32xi32>
      %23 = arith.cmpi sge, %19, %22 : vector<64x32xi32>
      %c2_i32_14 = arith.constant 2 : i32
      %24 = vector.broadcast %c2_i32_14 : i32 to vector<64x32xi32>
      %25 = arith.addi %22, %24 : vector<64x32xi32>
      %26 = arith.cmpi slt, %19, %25 : vector<64x32xi32>
      %27 = arith.andi %23, %26 : vector<64x32xi1>
      %28 = arith.extui %27 : vector<64x32xi1> to vector<64x32xi32>
      %29 = arith.sitofp %28 : vector<64x32xi32> to vector<64x32xf32>
      %30 = tpu.iota {dimensions = array<i32: 1>} : vector<32x64xi32>
      %31 = tpu.iota {dimensions = array<i32: 0>} : vector<32x64xi32>
      %c2_i32_15 = arith.constant 2 : i32
      %32 = vector.broadcast %c2_i32_15 : i32 to vector<32x64xi32>
      %33 = arith.muli %31, %32 : vector<32x64xi32>
      %34 = arith.cmpi sge, %30, %33 : vector<32x64xi32>
      %c2_i32_16 = arith.constant 2 : i32
      %35 = vector.broadcast %c2_i32_16 : i32 to vector<32x64xi32>
      %36 = arith.addi %33, %35 : vector<32x64xi32>
      %37 = arith.cmpi slt, %30, %36 : vector<32x64xi32>
      %38 = arith.andi %34, %37 : vector<32x64xi1>
      %39 = arith.extui %38 : vector<32x64xi1> to vector<32x64xi32>
      %40 = arith.sitofp %39 : vector<32x64xi32> to vector<32x64xf32>
      %c0_17 = arith.constant 0 : index
      %c0_18 = arith.constant 0 : index
      %41 = vector.load %arg7[%c0_17, %c0_18] : memref<1x64xf32, #tpu.memory_space<vmem>>, vector<1x64xf32>
      %cst_19 = arith.constant dense<0.000000e+00> : vector<1x32xf32>
      %42 = tpu.matmul %41, %29, %cst_19 {dimension_numbers = #tpu.dot_dimension_numbers<[1], [0], [0], [1], [0, 0, 1, 1], [], []>} : vector<1x64xf32>, vector<64x32xf32>, vector<1x32xf32> -> vector<1x32xf32>
      %c0_20 = arith.constant 0 : index
      %c0_21 = arith.constant 0 : index
      %43 = vector.load %arg8[%c0_20, %c0_21] : memref<1x64xf32, #tpu.memory_space<vmem>>, vector<1x64xf32>
      %cst_22 = arith.constant dense<0.000000e+00> : vector<1x32xf32>
      %44 = tpu.matmul %43, %29, %cst_22 {dimension_numbers = #tpu.dot_dimension_numbers<[1], [0], [0], [1], [0, 0, 1, 1], [], []>} : vector<1x64xf32>, vector<64x32xf32>, vector<1x32xf32> -> vector<1x32xf32>
      %cst_23 = arith.constant 1.280000e+02 : f32
      %45 = vector.broadcast %cst_23 : f32 to vector<1x32xf32>
      %46 = arith.divf %42, %45 : vector<1x32xf32>
      %cst_24 = arith.constant 1.280000e+02 : f32
      %47 = vector.broadcast %cst_24 : f32 to vector<1x32xf32>
      %48 = arith.divf %44, %47 : vector<1x32xf32>
      %49 = arith.mulf %46, %46 : vector<1x32xf32>
      %50 = arith.subf %48, %49 : vector<1x32xf32>
      %cst_25 = arith.constant 0.000000e+00 : f32
      %51 = vector.broadcast %cst_25 : f32 to vector<1x32xf32>
      %52 = arith.maximumf %50, %51 : vector<1x32xf32>
      %cst_26 = arith.constant 9.99999997E-7 : f32
      %53 = vector.broadcast %cst_26 : f32 to vector<1x32xf32>
      %54 = arith.addf %52, %53 : vector<1x32xf32>
      %55 = math.rsqrt %54 : vector<1x32xf32>
      %cst_27 = arith.constant dense<0.000000e+00> : vector<1x64xf32>
      %56 = tpu.matmul %46, %40, %cst_27 {dimension_numbers = #tpu.dot_dimension_numbers<[1], [0], [0], [1], [0, 0, 1, 1], [], []>} : vector<1x32xf32>, vector<32x64xf32>, vector<1x64xf32> -> vector<1x64xf32>
      %cst_28 = arith.constant dense<0.000000e+00> : vector<1x64xf32>
      %57 = tpu.matmul %55, %40, %cst_28 {dimension_numbers = #tpu.dot_dimension_numbers<[1], [0], [0], [1], [0, 0, 1, 1], [], []>} : vector<1x32xf32>, vector<32x64xf32>, vector<1x64xf32> -> vector<1x64xf32>
      %c0_29 = arith.constant 0 : index
      %c0_30 = arith.constant 0 : index
      %58 = vector.load %arg3[%c0_29, %c0_30] : memref<1x64xf32, #tpu.memory_space<vmem>>, vector<1x64xf32>
      %59 = arith.mulf %57, %58 : vector<1x64xf32>
      %c0_31 = arith.constant 0 : index
      %c0_32 = arith.constant 0 : index
      %c0_33 = arith.constant 0 : index
      %60 = vector.load %arg5[%c0_31, %c0_32, %c0_33] : memref<1x1x64xf32, #tpu.memory_space<vmem>>, vector<1x1x64xf32>
      %61 = vector.shape_cast %60 : vector<1x1x64xf32> to vector<1x64xf32>
      %62 = vector.shape_cast %59 : vector<1x64xf32> to vector<1x1x64xf32>
      tpu.vector_store %arg5[%c0_31, %c0_32, %c0_33], %62 {strides = array<i32>} : memref<1x1x64xf32, #tpu.memory_space<vmem>>, vector<1x1x64xf32>,
      %c0_34 = arith.constant 0 : index
      %c0_35 = arith.constant 0 : index
      %63 = vector.load %arg4[%c0_34, %c0_35] : memref<1x64xf32, #tpu.memory_space<vmem>>, vector<1x64xf32>
      %64 = arith.mulf %56, %59 : vector<1x64xf32>
      %65 = arith.subf %63, %64 : vector<1x64xf32>
      %c0_36 = arith.constant 0 : index
      %c0_37 = arith.constant 0 : index
      %c0_38 = arith.constant 0 : index
      %66 = vector.load %arg6[%c0_36, %c0_37, %c0_38] : memref<1x1x64xf32, #tpu.memory_space<vmem>>, vector<1x1x64xf32>
      %67 = vector.shape_cast %66 : vector<1x1x64xf32> to vector<1x64xf32>
      %68 = vector.shape_cast %65 : vector<1x64xf32> to vector<1x1x64xf32>
      tpu.vector_store %arg6[%c0_36, %c0_37, %c0_38], %68 {strides = array<i32>} : memref<1x1x64xf32, #tpu.memory_space<vmem>>, vector<1x1x64xf32>,
    } else {
    }
    return
  }
  func.func @transform_0(%arg0: i32, %arg1: i32) -> (i32, i32, i32) {
    %c0_i32 = arith.constant 0 : i32
    %c0_i32_0 = arith.constant 0 : i32
    return %arg0, %arg1, %c0_i32 : i32, i32, i32
  }
  func.func @transform_1(%arg0: i32, %arg1: i32) -> (i32, i32) {
    %c0_i32 = arith.constant 0 : i32
    %c0_i32_0 = arith.constant 0 : i32
    %c0_i32_1 = arith.constant 0 : i32
    return %c0_i32, %c0_i32_0 : i32, i32
  }
  func.func @transform_2(%arg0: i32, %arg1: i32) -> (i32, i32) {
    %c0_i32 = arith.constant 0 : i32
    %c0_i32_0 = arith.constant 0 : i32
    %c0_i32_1 = arith.constant 0 : i32
    return %c0_i32, %c0_i32_0 : i32, i32
  }
  func.func @transform_3(%arg0: i32, %arg1: i32) -> (i32, i32, i32) {
    %c0_i32 = arith.constant 0 : i32
    %c0_i32_0 = arith.constant 0 : i32
    %c0_i32_1 = arith.constant 0 : i32
    return %arg0, %c0_i32, %c0_i32_0 : i32, i32, i32
  }
  func.func @transform_4(%arg0: i32, %arg1: i32) -> (i32, i32, i32) {
    %c0_i32 = arith.constant 0 : i32
    %c0_i32_0 = arith.constant 0 : i32
    %c0_i32_1 = arith.constant 0 : i32
    return %arg0, %c0_i32, %c0_i32_0 : i32, i32, i32
  }
}

</mosaic_0001>

<llo_original>
// kernel: tpu_custom_call.1
$region0: #{tpu_custom_call.1}
  #allocation0 [shape = 'u32[]', space=smem, size = 0x4, offset = 0x4, fixed_abs, tag = 'smem constant byte address 0x4 - core index']
  #allocation1 [shape = 'u32[144,128]{1,0:T(1,128)}', space=vmem, size = 0x12000, scoped, tag = 'internal scratch']
  #allocation2 [shape = 'f32[1,64]{1,0:T(1,128)}', space=vmem, size = 0x200, scoped, tag = 'scratch operand']
  #allocation3 [shape = 'f32[1,64]{1,0:T(1,128)}', space=vmem, size = 0x200, scoped, tag = 'scratch operand']
  %s0 = inlined_call_operand.hbm [shape: f32[2,64,64], index: 0, kind: input, shape index: {}]
  %s1 = inlined_call_operand.vmem [shape: f32[1,64], index: 1, kind: input, shape index: {}]
  %s2 = inlined_call_operand.vmem [shape: f32[1,64], index: 2, kind: input, shape index: {}]
  %s3 = inlined_call_operand.hbm [shape: f32[2,1,64], index: 3, kind: output, shape index: {0}]
  %s4 = inlined_call_operand.hbm [shape: f32[2,1,64], index: 4, kind: output, shape index: {1}]
  %5 = xla_tuple %s3, %s4
  %s6 = sld [smem:[#allocation0]]
  $region65: #{tpu_custom_call.1} parent=0
    _
  %s8 = ssub.s32 1, %s6
  %s9 = scalar_select 0, %s8, %s6
  $region1: #{tpu_custom_call.1} parent=0
    #allocation4 [shape = 'u8[65536]{0}', space=vmem, size = 0x10000, scoped, tag = 'input window, operand 0']
    #allocation5 [shape = 's32[2]{0}', space=sflag, size = 0x8, scoped, tag = 'scoped memory for tpu_custom_call.1']
    #allocation6 [shape = 's32[2]{0}', space=sflag, size = 0x8, scoped, tag = 'scoped memory for tpu_custom_call.1']
    #allocation7 [shape = 'u8[1024]{0}', space=vmem, size = 0x400, scoped, tag = 'output window, operand 0']
    #allocation8 [shape = 'u8[1024]{0}', space=vmem, size = 0x400, scoped, tag = 'output window, operand 1']
    #allocation9 [shape = 's32[2]{0}', space=sflag, size = 0x8, scoped, tag = 'scoped memory for tpu_custom_call.1']
    %10 = vsyncpa [#allocation5], 0
    %s11 = scalar_lea.sflag [#allocation5], 1
    %12 = vsyncpa %s11, 0
    %13 = vsyncpa [#allocation6], 0
    %s14 = scalar_lea.sflag [#allocation6], 1
    %15 = vsyncpa %s14, 0
    %16 = vsyncpa [#allocation9], 0
    %s17 = scalar_lea.sflag [#allocation9], 1
    %18 = vsyncpa %s17, 0
    loop: start=0, step=1, limit=4
    $region2: #{tpu_custom_call.1} parent=1 // loop_pre_header
      _
    $region3: #{tpu_custom_call.1} parent=1 // loop_header
      %s20 = sphi 0, %s24
      %p21 = scmp.ge.s32.totalorder %s20, 4
      %s27 = sphi 0, %s39
      %s28 = sphi 0, %s35
      %s29 = sphi 0, %s27
      %s30 = sphi 0, %s28
      %s31 = sphi 0, %s29
      %s32 = sphi 0, %s30
      %s44 = sphi 0, %s46
      %s47 = sphi 0, %s44
      %s48 = sphi 0, %s47
      %s64 = sphi 0, %s48
      %s68 = sphi 0, %s68
      %s70 = sphi 0, %s68
      %s71 = sphi 0, %s70
      %s85 = sphi 0, %s71
      %s89 = sphi 0, %s89
      %s91 = sphi 0, %s89
      %s92 = sphi 0, %s91
      %s106 = sphi 0, %s92
      %s112 = sphi 0, %s114
      %s115 = sphi 0, %s112
      %s116 = sphi 0, %s115
      %s132 = sphi 0, %s116
      %s138 = sphi 0, %s140
      %s141 = sphi 0, %s138
      %s142 = sphi 0, %s141
      %s158 = sphi 0, %s142
    $region4: #{tpu_custom_call.1} parent=1 // loop_header_branch
      %23 = sbr.rel (%p21) target = $region8
    $region5: #{tpu_custom_call.1} parent=1 // loop_body
      %s25 = ssub.s32 %s20, 1
      %s26 = ssub.s32 %s20, 2
      %s33 = sadd.s32 1, %s28
      %p34 = scmp.ge.s32.totalorder %s33, 1
      %s35 = scalar_select %p34, 0, %s33
      %s36 = sadd.s32 1, %s27
      %s37 = scalar_select %p34, %s36, %s27
      %p38 = scmp.ge.s32.totalorder %s37, 2
      %s39 = scalar_select %p38, 0, %s37
      %s40 = ssub.s32 %s27, %s39
      %s41 = ssub.s32 %s28, %s35
      %s42 = sor.u32 %s40, %s41
      %p43 = scmp.eq.s32.totalorder %s42, 0
      %s45 = sadd.s32 %s44, 1
      %s46 = scalar_select %p43, %s44, %s45
      %p49 = pneg %p43
      %p50 = scmp.eq.s32.totalorder %s20, 1
      %p51 = por %p49, %p50
      %p52 = scmp.ne.s32.totalorder %s44, %s47
      %p53 = scmp.eq.s32.totalorder %s20, 0
      %p54 = por %p52, %p53
      %p55 = scmp.ne.s32.totalorder %s44, %s47
      %p56 = scmp.eq.s32.totalorder %s25, 1
      %p57 = por %p55, %p56
      %p58 = scmp.ne.s32.totalorder %s47, %s48
      %p59 = scmp.eq.s32.totalorder %s25, 0
      %p60 = por %p58, %p59
      %p61 = scmp.ne.s32.totalorder %s47, %s48
      %p62 = scmp.eq.s32.totalorder %s26, 1
      %p63 = por %p61, %p62
      %p65 = scmp.ne.s32.totalorder %s48, %s64
      %p66 = scmp.eq.s32.totalorder %s26, 0
      %p67 = por %p65, %p66
      %s69 = sadd.s32 %s68, 1
      %p72 = scmp.eq.s32.totalorder %s20, 1
      %p73 = scmp.ne.s32.totalorder %s68, %s70
      %p74 = scmp.eq.s32.totalorder %s20, 0
      %p75 = por %p73, %p74
      %p76 = scmp.ne.s32.totalorder %s68, %s70
      %p77 = scmp.eq.s32.totalorder %s25, 1
      %p78 = por %p76, %p77
      %p79 = scmp.ne.s32.totalorder %s70, %s71
      %p80 = scmp.eq.s32.totalorder %s25, 0
      %p81 = por %p79, %p80
      %p82 = scmp.ne.s32.totalorder %s70, %s71
      %p83 = scmp.eq.s32.totalorder %s26, 1
      %p84 = por %p82, %p83
      %p86 = scmp.ne.s32.totalorder %s71, %s85
      %p87 = scmp.eq.s32.totalorder %s26, 0
      %p88 = por %p86, %p87
      %s90 = sadd.s32 %s89, 1
      %p93 = scmp.eq.s32.totalorder %s20, 1
      %p94 = scmp.ne.s32.totalorder %s89, %s91
      %p95 = scmp.eq.s32.totalorder %s20, 0
      %p96 = por %p94, %p95
      %p97 = scmp.ne.s32.totalorder %s89, %s91
      %p98 = scmp.eq.s32.totalorder %s25, 1
      %p99 = por %p97, %p98
      %p100 = scmp.ne.s32.totalorder %s91, %s92
      %p101 = scmp.eq.s32.totalorder %s25, 0
      %p102 = por %p100, %p101
      %p103 = scmp.ne.s32.totalorder %s91, %s92
      %p104 = scmp.eq.s32.totalorder %s26, 1
      %p105 = por %p103, %p104
      %p107 = scmp.ne.s32.totalorder %s92, %s106
      %p108 = scmp.eq.s32.totalorder %s26, 0
      %p109 = por %p107, %p108
      %s110 = ssub.s32 %s27, %s39
      %p111 = scmp.eq.s32.totalorder %s110, 0
      %s113 = sadd.s32 %s112, 1
      %s114 = scalar_select %p111, %s112, %s113
      %p117 = pneg %p111
      %p118 = scmp.eq.s32.totalorder %s20, 1
      %p119 = por %p117, %p118
      %p120 = scmp.ne.s32.totalorder %s112, %s115
      %p121 = scmp.eq.s32.totalorder %s20, 0
      %p122 = por %p120, %p121
      %p123 = scmp.ne.s32.totalorder %s112, %s115
      %p124 = scmp.eq.s32.totalorder %s25, 1
      %p125 = por %p123, %p124
      %p126 = scmp.ne.s32.totalorder %s115, %s116
      %p127 = scmp.eq.s32.totalorder %s25, 0
      %p128 = por %p126, %p127
      %p129 = scmp.ne.s32.totalorder %s115, %s116
      %p130 = scmp.eq.s32.totalorder %s26, 1
      %p131 = por %p129, %p130
      %p133 = scmp.ne.s32.totalorder %s116, %s132
      %p134 = scmp.eq.s32.totalorder %s26, 0
      %p135 = por %p133, %p134
      %s136 = ssub.s32 %s27, %s39
      %p137 = scmp.eq.s32.totalorder %s136, 0
      %s139 = sadd.s32 %s138, 1
      %s140 = scalar_select %p137, %s138, %s139
      %p143 = pneg %p137
      %p144 = scmp.eq.s32.totalorder %s20, 1
      %p145 = por %p143, %p144
      %p146 = scmp.ne.s32.totalorder %s138, %s141
      %p147 = scmp.eq.s32.totalorder %s20, 0
      %p148 = por %p146, %p147
      %p149 = scmp.ne.s32.totalorder %s138, %s141
      %p150 = scmp.eq.s32.totalorder %s25, 1
      %p151 = por %p149, %p150
      %p152 = scmp.ne.s32.totalorder %s141, %s142
      %p153 = scmp.eq.s32.totalorder %s25, 0
      %p154 = por %p152, %p153
      %p155 = scmp.ne.s32.totalorder %s141, %s142
      %p156 = scmp.eq.s32.totalorder %s26, 1
      %p157 = por %p155, %p156
      %p159 = scmp.ne.s32.totalorder %s142, %s158
      %p160 = scmp.eq.s32.totalorder %s26, 0
      %p161 = por %p159, %p160
      %p162 = scmp.le.s32.totalorder 1, %s20
      %p163 = scmp.lt.s32.totalorder %s20, 3
      %p164 = pnand %p162, %p163
      %p165 = pneg %p164
      // Predicated region
      $region9: #{tpu_custom_call.1} parent=5 // pred_check
        _
      $region10: #{tpu_custom_call.1} parent=5 // pred_check_branch
        %167 = sbr.rel (%p164) target = $region12
      $region11: #{tpu_custom_call.1} parent=5 // pred_region
        %s168 = ssub.s32 %s20, 1
        // Predicated region
        $region13: #{tpu_custom_call.1} parent=11 // pred_check
          %p169 = pneg %p81
        $region14: #{tpu_custom_call.1} parent=11 // pred_check_branch
          %171 = sbr.rel (%p169) target = $region16
        $region15: #{tpu_custom_call.1} parent=11 // pred_region
          _
        $region16: #{tpu_custom_call.1} parent=11 // pred_fallthru
          _
        // Predicated region
        $region17: #{tpu_custom_call.1} parent=11 // pred_check
          %p172 = pneg %p102
        $region18: #{tpu_custom_call.1} parent=11 // pred_check_branch
          %174 = sbr.rel (%p172) target = $region20
        $region19: #{tpu_custom_call.1} parent=11 // pred_region
          _
        $region20: #{tpu_custom_call.1} parent=11 // pred_fallthru
          _
      $region12: #{tpu_custom_call.1} parent=5 // pred_fallthru
        _
      %p175 = scmp.lt.s32.totalorder %s20, 2
      // Predicated region
      $region21: #{tpu_custom_call.1} parent=5 // pred_check
        %p176 = pneg %p175
      $region22: #{tpu_custom_call.1} parent=5 // pred_check_branch
        %178 = sbr.rel (%p176) target = $region24
      $region23: #{tpu_custom_call.1} parent=5 // pred_region
        // Predicated region
        $region25: #{tpu_custom_call.1} parent=23 // pred_check
          %p179 = pneg %p54
        $region26: #{tpu_custom_call.1} parent=23 // pred_check_branch
          %181 = sbr.rel (%p179) target = $region28
        $region27: #{tpu_custom_call.1} parent=23 // pred_region
          %s182 = sand.u32 %s44, 1
          %s183 = scalar_lea.sflag [#allocation5], %s182
          %s184 = sand.u32 %s44, 1
          %s185 = smul.addr %s184, 64
          %s186 = scalar_lea.vmem [#allocation4], %s185
          %s187 = smul.u32 8, %s28
          %s189 = ssub.s32 1024, 1024
          %190 = vsyncadd %s183, %s189
          %s191 = smul.addr %s27, 8
          %s192 = sadd.s32 %s187, %s191
          %s193 = smul.addr %s192, 128
          %s194 = scalar_lea.hbm %s0, %s193
          %s195 = sshll.u32 %s186, 4
          %s196 = int_to_ptr.vmem [resolvable:$true] %s195
          %201 = dma.hbm_to_vmem [thread:$0]  %s194, 1024, %s196, %s183, 128, 128, 8
        $region28: #{tpu_custom_call.1} parent=23 // pred_fallthru
          _
      $region24: #{tpu_custom_call.1} parent=5 // pred_fallthru
        _
      %p202 = scmp.le.s32.totalorder 1, %s20
      %p203 = scmp.lt.s32.totalorder %s20, 3
      %p204 = pnand %p202, %p203
      %p205 = pneg %p204
      // Predicated region
      $region29: #{tpu_custom_call.1} parent=5 // pred_check
        _
      $region30: #{tpu_custom_call.1} parent=5 // pred_check_branch
        %207 = sbr.rel (%p204) target = $region32
      $region31: #{tpu_custom_call.1} parent=5 // pred_region
        %s208 = ssub.s32 %s20, 1
        %s209 = sand.u32 %s47, 1
        %s210 = scalar_lea.sflag [#allocation5], %s209
        %s211 = sand.u32 %s47, 1
        %s212 = smul.addr %s211, 64
        %s213 = scalar_lea.vmem [#allocation4], %s212
        // Predicated region
        $region33: #{tpu_custom_call.1} parent=31 // pred_check
          %p214 = pneg %p60
        $region34: #{tpu_custom_call.1} parent=31 // pred_check_branch
          %216 = sbr.rel (%p214) target = $region36
        $region35: #{tpu_custom_call.1} parent=31 // pred_region
          %217 = dma.done %s210, 1024
        $region36: #{tpu_custom_call.1} parent=31 // pred_fallthru
          _
        %s218 = sand.u32 %s47, 1
        %s219 = scalar_lea.sflag [#allocation5], %s218
        %s220 = sand.u32 %s47, 1
        %s221 = smul.addr %s220, 64
        %s222 = scalar_lea.vmem [#allocation4], %s221
        %p223 = pneg %p60
        %p224 = pneg %p57
        %p225 = pneg %p81
        %p226 = pneg %p78
        %p227 = pneg %p102
        %p228 = pneg %p99
        %p229 = pneg %p128
        %p230 = pneg %p125
        %s231 = sand.u32 %s115, 1
        %s232 = scalar_lea.sflag [#allocation6], %s231
        %s233 = sand.u32 %s115, 1
        %s234 = scalar_lea.vmem [#allocation7], %s233
        %p235 = pneg %p154
        %p236 = pneg %p151
        %s237 = sand.u32 %s141, 1
        %s238 = scalar_lea.sflag [#allocation9], %s237
        %s239 = sand.u32 %s141, 1
        %s240 = scalar_lea.vmem [#allocation8], %s239
        %s241 = smul.u32 8, %s30
        %p242 = scmp.eq.s32.totalorder %s30, 0
        // Predicated region
        $region37: #{tpu_custom_call.1} parent=31 // pred_check
          %p243 = pneg %p242
        $region38: #{tpu_custom_call.1} parent=31 // pred_check_branch
          %245 = sbr.rel (%p243) target = $region40
        $region39: #{tpu_custom_call.1} parent=31 // pred_region
          %vm246 = vcmask 516096
          %247 = vst.msk [vmem:[#allocation2] sm:$0x1] %vm246, 0.0
          %248 = vst.msk [vmem:[#allocation3] sm:$0x1] %vm246, 0.0
        $region40: #{tpu_custom_call.1} parent=31 // pred_fallthru
          _
        %v249 = vld [vmem:[%s213] sm:$0xff]
        %v250 = vld [vmem:[%s213 + $0x8] sm:$0xff]
        %v251 = vld [vmem:[%s213 + $0x10] sm:$0xff]
        %v252 = vld [vmem:[%s213 + $0x18] sm:$0xff]
        %v253 = vld [vmem:[%s213 + $0x20] sm:$0xff]
        %v254 = vld [vmem:[%s213 + $0x28] sm:$0xff]
        %v255 = vld [vmem:[%s213 + $0x30] sm:$0xff]
        %v256 = vld [vmem:[%s213 + $0x38] sm:$0xff]
        %v257 = vld [vmem:[#allocation2] sm:$0x1]
        %vm258 = vcmask 523264
        %v259 = vsel %vm258, %v249, 0.0
        %v260 = vsel %vm258, %v250, 0.0
        %v261 = vadd.f32 %v259, %v260
        %v262 = vsel %vm258, %v251, 0.0
        %v263 = vadd.f32 %v261, %v262
        %v264 = vsel %vm258, %v252, 0.0
        %v265 = vadd.f32 %v263, %v264
        %v266 = vsel %vm258, %v253, 0.0
        %v267 = vadd.f32 %v265, %v266
        %v268 = vsel %vm258, %v254, 0.0
        %v269 = vadd.f32 %v267, %v268
        %v270 = vsel %vm258, %v255, 0.0
        %v271 = vadd.f32 %v269, %v270
        %v272 = vsel %vm258, %v256, 0.0
        %v273 = vadd.f32 %v271, %v272
        %v274 = vrot.slane %v273, 4
        %v275 = vadd.f32 %v273, %v274
        %v276 = vrot.slane %v275, 2
        %v277 = vadd.f32 %v275, %v276
        %v278 = vrot.slane %v277, 1
        %v279 = vadd.f32 %v277, %v278
        %v280 = vadd.f32 %v257, %v279
        %vm281 = vcmask 516096
        %282 = vst.msk [vmem:[#allocation2] sm:$0x1] %vm281, %v280
        %v283 = vld [vmem:[#allocation3] sm:$0x1]
        %v284 = vmul.f32 %v249, %v249
        %v285 = vmul.f32 %v250, %v250
        %v286 = vmul.f32 %v251, %v251
        %v287 = vmul.f32 %v252, %v252
        %v288 = vmul.f32 %v253, %v253
        %v289 = vmul.f32 %v254, %v254
        %v290 = vmul.f32 %v255, %v255
        %v291 = vmul.f32 %v256, %v256
        %v292 = vsel %vm258, %v284, 0.0
        %v293 = vsel %vm258, %v285, 0.0
        %v294 = vadd.f32 %v292, %v293
        %v295 = vsel %vm258, %v286, 0.0
        %v296 = vadd.f32 %v294, %v295
        %v297 = vsel %vm258, %v287, 0.0
        %v298 = vadd.f32 %v296, %v297
        %v299 = vsel %vm258, %v288, 0.0
        %v300 = vadd.f32 %v298, %v299
        %v301 = vsel %vm258, %v289, 0.0
        %v302 = vadd.f32 %v300, %v301
        %v303 = vsel %vm258, %v290, 0.0
        %v304 = vadd.f32 %v302, %v303
        %v305 = vsel %vm258, %v291, 0.0
        %v306 = vadd.f32 %v304, %v305
        %v307 = vrot.slane %v306, 4
        %v308 = vadd.f32 %v306, %v307
        %v309 = vrot.slane %v308, 2
        %v310 = vadd.f32 %v308, %v309
        %v311 = vrot.slane %v310, 1
        %v312 = vadd.f32 %v310, %v311
        %v313 = vadd.f32 %v283, %v312
        %314 = vst.msk [vmem:[#allocation3] sm:$0x1] %vm281, %v313
        // Predicated region
        $region41: #{tpu_custom_call.1} parent=31 // pred_check
          %p315 = pneg %p242
        $region42: #{tpu_custom_call.1} parent=31 // pred_check_branch
          %317 = sbr.rel (%p315) target = $region44
        $region43: #{tpu_custom_call.1} parent=31 // pred_region
          %v318 = vlaneseq
          %v319 = vshrl.u32 %v318, 7
          %v320 = vadd.s32 %v319, 8
          %v321 = vadd.s32 %v319, 16
          %v322 = vadd.s32 %v319, 24
          %v323 = vadd.s32 %v319, 32
          %v324 = vadd.s32 %v319, 40
          %v325 = vadd.s32 %v319, 48
          %v326 = vadd.s32 %v319, 56
          %v327 = vlaneseq
          %v328 = vand.u32 %v327, 127
          %v329 = vmul.u32 %v328, 2
          %vm330 = vcmp.ge.s32.totalorder %v319, %v329
          %vm331 = vcmp.ge.s32.totalorder %v320, %v329
          %vm332 = vcmp.ge.s32.totalorder %v321, %v329
          %vm333 = vcmp.ge.s32.totalorder %v322, %v329
          %vm334 = vcmp.ge.s32.totalorder %v323, %v329
          %vm335 = vcmp.ge.s32.totalorder %v324, %v329
          %vm336 = vcmp.ge.s32.totalorder %v325, %v329
          %vm337 = vcmp.ge.s32.totalorder %v326, %v329
          %v338 = vadd.s32 %v329, 2
          %vm339 = vcmp.lt.s32.totalorder %v319, %v338
          %vm340 = vcmp.lt.s32.totalorder %v320, %v338
          %vm341 = vcmp.lt.s32.totalorder %v321, %v338
          %vm342 = vcmp.lt.s32.totalorder %v322, %v338
          %vm343 = vcmp.lt.s32.totalorder %v323, %v338
          %vm344 = vcmp.lt.s32.totalorder %v324, %v338
          %vm345 = vcmp.lt.s32.totalorder %v325, %v338
          %vm346 = vcmp.lt.s32.totalorder %v326, %v338
          %vm347 = vmand %vm330, %vm339
          %vm348 = vmand %vm331, %vm340
          %vm349 = vmand %vm332, %vm341
          %vm350 = vmand %vm333, %vm342
          %vm351 = vmand %vm334, %vm343
          %vm352 = vmand %vm335, %vm344
          %vm353 = vmand %vm336, %vm345
          %vm354 = vmand %vm337, %vm346
          %v355 = vsel %vm347, 1, 0
          %v356 = vsel %vm348, 1, 0
          %v357 = vsel %vm349, 1, 0
          %v358 = vsel %vm350, 1, 0
          %v359 = vsel %vm351, 1, 0
          %v360 = vsel %vm352, 1, 0
          %v361 = vsel %vm353, 1, 0
          %v362 = vsel %vm354, 1, 0
          %v363 = vcvt.s32.f32 %v355
          %v364 = vcvt.s32.f32 %v356
          %v365 = vcvt.s32.f32 %v357
          %v366 = vcvt.s32.f32 %v358
          %v367 = vcvt.s32.f32 %v359
          %v368 = vcvt.s32.f32 %v360
          %v369 = vcvt.s32.f32 %v361
          %v370 = vcvt.s32.f32 %v362
          %v371 = vmul.u32 %v319, 2
          %v372 = vmul.u32 %v320, 2
          %v373 = vmul.u32 %v321, 2
          %v374 = vmul.u32 %v322, 2
          %vm375 = vcmp.ge.s32.totalorder %v328, %v371
          %vm376 = vcmp.ge.s32.totalorder %v328, %v372
          %vm377 = vcmp.ge.s32.totalorder %v328, %v373
          %vm378 = vcmp.ge.s32.totalorder %v328, %v374
          %v379 = vadd.s32 %v371, 2
          %v380 = vadd.s32 %v372, 2
          %v381 = vadd.s32 %v373, 2
          %v382 = vadd.s32 %v374, 2
          %vm383 = vcmp.lt.s32.totalorder %v328, %v379
          %vm384 = vcmp.lt.s32.totalorder %v328, %v380
          %vm385 = vcmp.lt.s32.totalorder %v328, %v381
          %vm386 = vcmp.lt.s32.totalorder %v328, %v382
          %vm387 = vmand %vm375, %vm383
          %vm388 = vmand %vm376, %vm384
          %vm389 = vmand %vm377, %vm385
          %vm390 = vmand %vm378, %vm386
          %v391 = vsel %vm387, 1, 0
          %v392 = vsel %vm388, 1, 0
          %v393 = vsel %vm389, 1, 0
          %v394 = vsel %vm390, 1, 0
          %v395 = vcvt.s32.f32 %v391
          %v396 = vcvt.s32.f32 %v392
          %v397 = vcvt.s32.f32 %v393
          %v398 = vcvt.s32.f32 %v394
          %v399 = vld [vmem:[#allocation2] sm:$0x1]
          %v401 = vsel %vm258, %v399, 0
          %403 = vmatprep.subr.mxu0 0.0
          %404 = vmatpush1.msra.mxu0 %v363
          %405 = vmatprep.subr.mxu0 0.0
          %406 = vmatpush1.msra.mxu0 %v364
          %407 = vmatprep.subr.mxu0 0.0
          %408 = vmatpush1.msra.mxu0 %v365
          %409 = vmatprep.subr.mxu0 0.0
          %410 = vmatpush1.msra.mxu0 %v366
          %411 = vmatprep.subr.mxu0 0.0
          %412 = vmatpush1.msra.mxu0 %v367
          %413 = vmatprep.subr.mxu0 0.0
          %414 = vmatpush1.msra.mxu0 %v368
          %415 = vmatprep.subr.mxu0 0.0
          %416 = vmatpush1.msra.mxu0 %v369
          %417 = vmatprep.subr.mxu0 0.0
          %418 = vmatpush1.msra.mxu0 %v370
          %419 = vmatprep.subr.mxu0 0.0
          %420 = vmatpush1.msra.mxu0 0.0
          %421 = vmatprep.subr.mxu0 0.0
          %422 = vmatpush1.msra.mxu0 0.0
          %423 = vmatprep.subr.mxu0 0.0
          %424 = vmatpush1.msra.mxu0 0.0
          %425 = vmatprep.subr.mxu0 0.0
          %426 = vmatpush1.msra.mxu0 0.0
          %427 = vmatprep.subr.mxu0 0.0
          %428 = vmatpush1.msra.mxu0 0.0
          %429 = vmatprep.subr.mxu0 0.0
          %430 = vmatpush1.msra.mxu0 0.0
          %431 = vmatprep.subr.mxu0 0.0
          %432 = vmatpush1.msra.mxu0 0.0
          %433 = vmatprep.subr.mxu0 0.0
          %434 = vmatpush1.msra.mxu0 0.0
          %435 = vmatprep.subr.mxu0 0.0
          %436 = vmatpush1.msra.mxu0 0.0
          %437 = vmatprep.subr.mxu0 0.0
          %438 = vmatpush1.msra.mxu0 0.0
          %439 = vmatprep.subr.mxu0 0.0
          %440 = vmatpush1.msra.mxu0 0.0
          %441 = vmatprep.subr.mxu0 0.0
          %442 = vmatpush1.msra.mxu0 0.0
          %443 = vmatprep.subr.mxu0 0.0
          %444 = vmatpush1.msra.mxu0 0.0
          %445 = vmatprep.subr.mxu0 0.0
          %446 = vmatpush1.msra.mxu0 0.0
          %447 = vmatprep.subr.mxu0 0.0
          %448 = vmatpush1.msra.mxu0 0.0
          %449 = vmatprep.subr.mxu0 0.0
          %450 = vmatpush1.msra.mxu0 0.0
          %451 = vmatprep.subr.mxu0 0.0
          %452 = vmatpush1.msra.mxu0 0.0
          %453 = vmatprep.subr.mxu0 0.0
          %454 = vmatpush1.msra.mxu0 0.0
          %455 = vmatprep.subr.mxu0 0.0
          %456 = vmatpush1.msra.mxu0 0.0
          %457 = vmatprep.subr.mxu0 0.0
          %458 = vmatpush1.msra.mxu0 0.0
          %459 = vmatprep.subr.mxu0 0.0
          %460 = vmatpush1.msra.mxu0 0.0
          %461 = vmatprep.subr.mxu0 0.0
          %462 = vmatpush1.msra.mxu0 0.0
          %463 = vmatprep.subr.mxu0 0.0
          %464 = vmatpush1.msra.mxu0 0.0
          %465 = vmatprep.subr.mxu0 0.0
          %466 = vmatpush1.msra.mxu0 0.0
          %467 = vmatprep.mubr.f32.mxu0 0.0
          %468 = vmatmul.mubr.f32.gmra.mrb[0].mxu0 %v401
          %v469 = vpop.f32.mrb[0].mxu0
          %v470 = vadd.f32 0.0, %v469
          %v471 = vpop.f32.mrb[0].mxu0
          %472 = vdwg.mxu0
          %v473 = vld [vmem:[#allocation3] sm:$0x1]
          %v475 = vsel %vm258, %v473, 0
          %477 = vmatprep.subr.mxu0 0.0
          %478 = vmatpush1.msra.mxu0 %v363
          %479 = vmatprep.subr.mxu0 0.0
          %480 = vmatpush1.msra.mxu0 %v364
          %481 = vmatprep.subr.mxu0 0.0
          %482 = vmatpush1.msra.mxu0 %v365
          %483 = vmatprep.subr.mxu0 0.0
          %484 = vmatpush1.msra.mxu0 %v366
          %485 = vmatprep.subr.mxu0 0.0
          %486 = vmatpush1.msra.mxu0 %v367
          %487 = vmatprep.subr.mxu0 0.0
          %488 = vmatpush1.msra.mxu0 %v368
          %489 = vmatprep.subr.mxu0 0.0
          %490 = vmatpush1.msra.mxu0 %v369
          %491 = vmatprep.subr.mxu0 0.0
          %492 = vmatpush1.msra.mxu0 %v370
          %493 = vmatprep.subr.mxu0 0.0
          %494 = vmatpush1.msra.mxu0 0.0
          %495 = vmatprep.subr.mxu0 0.0
          %496 = vmatpush1.msra.mxu0 0.0
          %497 = vmatprep.subr.mxu0 0.0
          %498 = vmatpush1.msra.mxu0 0.0
          %499 = vmatprep.subr.mxu0 0.0
          %500 = vmatpush1.msra.mxu0 0.0
          %501 = vmatprep.subr.mxu0 0.0
          %502 = vmatpush1.msra.mxu0 0.0
          %503 = vmatprep.subr.mxu0 0.0
          %504 = vmatpush1.msra.mxu0 0.0
          %505 = vmatprep.subr.mxu0 0.0
          %506 = vmatpush1.msra.mxu0 0.0
          %507 = vmatprep.subr.mxu0 0.0
          %508 = vmatpush1.msra.mxu0 0.0
          %509 = vmatprep.subr.mxu0 0.0
          %510 = vmatpush1.msra.mxu0 0.0
          %511 = vmatprep.subr.mxu0 0.0
          %512 = vmatpush1.msra.mxu0 0.0
          %513 = vmatprep.subr.mxu0 0.0
          %514 = vmatpush1.msra.mxu0 0.0
          %515 = vmatprep.subr.mxu0 0.0
          %516 = vmatpush1.msra.mxu0 0.0
          %517 = vmatprep.subr.mxu0 0.0
          %518 = vmatpush1.msra.mxu0 0.0
          %519 = vmatprep.subr.mxu0 0.0
          %520 = vmatpush1.msra.mxu0 0.0
          %521 = vmatprep.subr.mxu0 0.0
          %522 = vmatpush1.msra.mxu0 0.0
          %523 = vmatprep.subr.mxu0 0.0
          %524 = vmatpush1.msra.mxu0 0.0
          %525 = vmatprep.subr.mxu0 0.0
          %526 = vmatpush1.msra.mxu0 0.0
          %527 = vmatprep.subr.mxu0 0.0
          %528 = vmatpush1.msra.mxu0 0.0
          %529 = vmatprep.subr.mxu0 0.0
          %530 = vmatpush1.msra.mxu0 0.0
          %531 = vmatprep.subr.mxu0 0.0
          %532 = vmatpush1.msra.mxu0 0.0
          %533 = vmatprep.subr.mxu0 0.0
          %534 = vmatpush1.msra.mxu0 0.0
          %535 = vmatprep.subr.mxu0 0.0
          %536 = vmatpush1.msra.mxu0 0.0
          %537 = vmatprep.subr.mxu0 0.0
          %538 = vmatpush1.msra.mxu0 0.0
          %539 = vmatprep.subr.mxu0 0.0
          %540 = vmatpush1.msra.mxu0 0.0
          %541 = vmatprep.mubr.f32.mxu0 0.0
          %542 = vmatmul.mubr.f32.gmra.mrb[0].mxu0 %v475
          %v543 = vpop.f32.mrb[0].mxu0
          %v544 = vadd.f32 0.0, %v543
          %v545 = vpop.f32.mrb[0].mxu0
          %546 = vdwg.mxu0
          %v547 = vrcp.pop 128.0
          %v548 = vmul.f32 %v470, %v547
          %v549 = vmul.f32 %v544, %v547
          %v550 = vmul.f32 %v548, %v548
          %v551 = vsub.f32 %v549, %v550
          %v552 = vmax.f32 %v551, 0.0
          %v553 = vadd.f32 %v552, 1e-06
          %v554 = vrsqrt.pop %v553
          %vm555 = vcmask 261120
          %v557 = vsel %vm555, %v548, 0
          %559 = vmatprep.subr.mxu0 0.0
          %560 = vmatpush1.msra.mxu0 %v395
          %561 = vmatprep.subr.mxu0 0.0
          %562 = vmatpush1.msra.mxu0 %v396
          %563 = vmatprep.subr.mxu0 0.0
          %564 = vmatpush1.msra.mxu0 %v397
          %565 = vmatprep.subr.mxu0 0.0
          %566 = vmatpush1.msra.mxu0 %v398
          %567 = vmatprep.subr.mxu0 0.0
          %568 = vmatpush1.msra.mxu0 0.0
          %569 = vmatprep.subr.mxu0 0.0
          %570 = vmatpush1.msra.mxu0 0.0
          %571 = vmatprep.subr.mxu0 0.0
          %572 = vmatpush1.msra.mxu0 0.0
          %573 = vmatprep.subr.mxu0 0.0
          %574 = vmatpush1.msra.mxu0 0.0
          %575 = vmatprep.subr.mxu0 0.0
          %576 = vmatpush1.msra.mxu0 0.0
          %577 = vmatprep.subr.mxu0 0.0
          %578 = vmatpush1.msra.mxu0 0.0
          %579 = vmatprep.subr.mxu0 0.0
          %580 = vmatpush1.msra.mxu0 0.0
          %581 = vmatprep.subr.mxu0 0.0
          %582 = vmatpush1.msra.mxu0 0.0
          %583 = vmatprep.subr.mxu0 0.0
          %584 = vmatpush1.msra.mxu0 0.0
          %585 = vmatprep.subr.mxu0 0.0
          %586 = vmatpush1.msra.mxu0 0.0
          %587 = vmatprep.subr.mxu0 0.0
          %588 = vmatpush1.msra.mxu0 0.0
          %589 = vmatprep.subr.mxu0 0.0
          %590 = vmatpush1.msra.mxu0 0.0
          %591 = vmatprep.subr.mxu0 0.0
          %592 = vmatpush1.msra.mxu0 0.0
          %593 = vmatprep.subr.mxu0 0.0
          %594 = vmatpush1.msra.mxu0 0.0
          %595 = vmatprep.subr.mxu0 0.0
          %596 = vmatpush1.msra.mxu0 0.0
          %597 = vmatprep.subr.mxu0 0.0
          %598 = vmatpush1.msra.mxu0 0.0
          %599 = vmatprep.subr.mxu0 0.0
          %600 = vmatpush1.msra.mxu0 0.0
          %601 = vmatprep.subr.mxu0 0.0
          %602 = vmatpush1.msra.mxu0 0.0
          %603 = vmatprep.subr.mxu0 0.0
          %604 = vmatpush1.msra.mxu0 0.0
          %605 = vmatprep.subr.mxu0 0.0
          %606 = vmatpush1.msra.mxu0 0.0
          %607 = vmatprep.subr.mxu0 0.0
          %608 = vmatpush1.msra.mxu0 0.0
          %609 = vmatprep.subr.mxu0 0.0
          %610 = vmatpush1.msra.mxu0 0.0
          %611 = vmatprep.subr.mxu0 0.0
          %612 = vmatpush1.msra.mxu0 0.0
          %613 = vmatprep.subr.mxu0 0.0
          %614 = vmatpush1.msra.mxu0 0.0
          %615 = vmatprep.subr.mxu0 0.0
          %616 = vmatpush1.msra.mxu0 0.0
          %617 = vmatprep.subr.mxu0 0.0
          %618 = vmatpush1.msra.mxu0 0.0
          %619 = vmatprep.subr.mxu0 0.0
          %620 = vmatpush1.msra.mxu0 0.0
          %621 = vmatprep.subr.mxu0 0.0
          %622 = vmatpush1.msra.mxu0 0.0
          %623 = vmatprep.mubr.f32.mxu0 0.0
          %624 = vmatmul.mubr.f32.gmra.mrb[0].mxu0 %v557
          %v625 = vpop.f32.mrb[0].mxu0
          %v626 = vadd.f32 0.0, %v625
          %v627 = vpop.f32.mrb[0].mxu0
          %628 = vdwg.mxu0
          %v630 = vsel %vm555, %v554, 0
          %632 = vmatprep.subr.mxu0 0.0
          %633 = vmatpush1.msra.mxu0 %v395
          %634 = vmatprep.subr.mxu0 0.0
          %635 = vmatpush1.msra.mxu0 %v396
          %636 = vmatprep.subr.mxu0 0.0
          %637 = vmatpush1.msra.mxu0 %v397
          %638 = vmatprep.subr.mxu0 0.0
          %639 = vmatpush1.msra.mxu0 %v398
          %640 = vmatprep.subr.mxu0 0.0
          %641 = vmatpush1.msra.mxu0 0.0
          %642 = vmatprep.subr.mxu0 0.0
          %643 = vmatpush1.msra.mxu0 0.0
          %644 = vmatprep.subr.mxu0 0.0
          %645 = vmatpush1.msra.mxu0 0.0
          %646 = vmatprep.subr.mxu0 0.0
          %647 = vmatpush1.msra.mxu0 0.0
          %648 = vmatprep.subr.mxu0 0.0
          %649 = vmatpush1.msra.mxu0 0.0
          %650 = vmatprep.subr.mxu0 0.0
          %651 = vmatpush1.msra.mxu0 0.0
          %652 = vmatprep.subr.mxu0 0.0
          %653 = vmatpush1.msra.mxu0 0.0
          %654 = vmatprep.subr.mxu0 0.0
          %655 = vmatpush1.msra.mxu0 0.0
          %656 = vmatprep.subr.mxu0 0.0
          %657 = vmatpush1.msra.mxu0 0.0
          %658 = vmatprep.subr.mxu0 0.0
          %659 = vmatpush1.msra.mxu0 0.0
          %660 = vmatprep.subr.mxu0 0.0
          %661 = vmatpush1.msra.mxu0 0.0
          %662 = vmatprep.subr.mxu0 0.0
          %663 = vmatpush1.msra.mxu0 0.0
          %664 = vmatprep.subr.mxu0 0.0
          %665 = vmatpush1.msra.mxu0 0.0
          %666 = vmatprep.subr.mxu0 0.0
          %667 = vmatpush1.msra.mxu0 0.0
          %668 = vmatprep.subr.mxu0 0.0
          %669 = vmatpush1.msra.mxu0 0.0
          %670 = vmatprep.subr.mxu0 0.0
          %671 = vmatpush1.msra.mxu0 0.0
          %672 = vmatprep.subr.mxu0 0.0
          %673 = vmatpush1.msra.mxu0 0.0
          %674 = vmatprep.subr.mxu0 0.0
          %675 = vmatpush1.msra.mxu0 0.0
          %676 = vmatprep.subr.mxu0 0.0
          %677 = vmatpush1.msra.mxu0 0.0
          %678 = vmatprep.subr.mxu0 0.0
          %679 = vmatpush1.msra.mxu0 0.0
          %680 = vmatprep.subr.mxu0 0.0
          %681 = vmatpush1.msra.mxu0 0.0
          %682 = vmatprep.subr.mxu0 0.0
          %683 = vmatpush1.msra.mxu0 0.0
          %684 = vmatprep.subr.mxu0 0.0
          %685 = vmatpush1.msra.mxu0 0.0
          %686 = vmatprep.subr.mxu0 0.0
          %687 = vmatpush1.msra.mxu0 0.0
          %688 = vmatprep.subr.mxu0 0.0
          %689 = vmatpush1.msra.mxu0 0.0
          %690 = vmatprep.subr.mxu0 0.0
          %691 = vmatpush1.msra.mxu0 0.0
          %692 = vmatprep.subr.mxu0 0.0
          %693 = vmatpush1.msra.mxu0 0.0
          %694 = vmatprep.subr.mxu0 0.0
          %695 = vmatpush1.msra.mxu0 0.0
          %696 = vmatprep.mubr.f32.mxu0 0.0
          %697 = vmatmul.mubr.f32.gmra.mrb[0].mxu0 %v630
          %v698 = vpop.f32.mrb[0].mxu0
          %v699 = vadd.f32 0.0, %v698
          %v700 = vpop.f32.mrb[0].mxu0
          %701 = vdwg.mxu0
          %v702 = vld [vmem:[%s1] sm:$0x1]
          %v703 = vmul.f32 %v699, %v702
          %704 = vst.msk [vmem:[%s234] sm:$0x1] %vm281, %v703
          %v705 = vld [vmem:[%s2] sm:$0x1]
          %v706 = vmul.f32 %v626, %v703
          %v707 = vsub.f32 %v705, %v706
          %708 = vst.msk [vmem:[%s240] sm:$0x1] %vm281, %v707
        $region44: #{tpu_custom_call.1} parent=31 // pred_fallthru
          _
        %s709 = sand.u32 %s115, 1
        %s710 = scalar_lea.sflag [#allocation6], %s709
        %s711 = sand.u32 %s115, 1
        %s712 = scalar_lea.vmem [#allocation7], %s711
        %s713 = sand.u32 %s141, 1
        %s714 = scalar_lea.sflag [#allocation9], %s713
        %s715 = sand.u32 %s141, 1
        %s716 = scalar_lea.vmem [#allocation8], %s715
        // Predicated region
        $region45: #{tpu_custom_call.1} parent=31 // pred_check
          %p717 = pneg %p125
        $region46: #{tpu_custom_call.1} parent=31 // pred_check_branch
          %719 = sbr.rel (%p717) target = $region48
        $region47: #{tpu_custom_call.1} parent=31 // pred_region
          %s721 = ssub.s32 16, 16
          %722 = vsyncadd %s710, %s721
          %s723 = smul.addr %s29, 16
          %s724 = scalar_lea.hbm %s3, %s723
          %s726 = sshll.u32 %s712, 4
          %s727 = int_to_ptr.vmem [resolvable:$true] %s726
          %729 = dma.vmem_to_hbm [thread:$0]  %s727, 16, %s724, %s710
        $region48: #{tpu_custom_call.1} parent=31 // pred_fallthru
          _
        // Predicated region
        $region49: #{tpu_custom_call.1} parent=31 // pred_check
          %p730 = pneg %p151
        $region50: #{tpu_custom_call.1} parent=31 // pred_check_branch
          %732 = sbr.rel (%p730) target = $region52
        $region51: #{tpu_custom_call.1} parent=31 // pred_region
          %s734 = ssub.s32 16, 16
          %735 = vsyncadd %s714, %s734
          %s736 = smul.addr %s29, 16
          %s737 = scalar_lea.hbm %s4, %s736
          %s739 = sshll.u32 %s716, 4
          %s740 = int_to_ptr.vmem [resolvable:$true] %s739
          %742 = dma.vmem_to_hbm [thread:$0]  %s740, 16, %s737, %s714
        $region52: #{tpu_custom_call.1} parent=31 // pred_fallthru
          _
      $region32: #{tpu_custom_call.1} parent=5 // pred_fallthru
        _
      %p743 = scmp.le.s32.totalorder 2, %s20
      // Predicated region
      $region53: #{tpu_custom_call.1} parent=5 // pred_check
        %p744 = pneg %p743
      $region54: #{tpu_custom_call.1} parent=5 // pred_check_branch
        %746 = sbr.rel (%p744) target = $region56
      $region55: #{tpu_custom_call.1} parent=5 // pred_region
        %s747 = ssub.s32 %s20, 2
        // Predicated region
        $region57: #{tpu_custom_call.1} parent=55 // pred_check
          %p748 = pneg %p131
        $region58: #{tpu_custom_call.1} parent=55 // pred_check_branch
          %750 = sbr.rel (%p748) target = $region60
        $region59: #{tpu_custom_call.1} parent=55 // pred_region
          %s751 = sand.u32 %s116, 1
          %s752 = scalar_lea.sflag [#allocation6], %s751
          %s753 = sand.u32 %s116, 1
          %s754 = scalar_lea.vmem [#allocation7], %s753
          %755 = dma.done %s752, 16
        $region60: #{tpu_custom_call.1} parent=55 // pred_fallthru
          _
        // Predicated region
        $region61: #{tpu_custom_call.1} parent=55 // pred_check
          %p756 = pneg %p157
        $region62: #{tpu_custom_call.1} parent=55 // pred_check_branch
          %758 = sbr.rel (%p756) target = $region64
        $region63: #{tpu_custom_call.1} parent=55 // pred_region
          %s759 = sand.u32 %s142, 1
          %s760 = scalar_lea.sflag [#allocation9], %s759
          %s761 = sand.u32 %s142, 1
          %s762 = scalar_lea.vmem [#allocation8], %s761
          %763 = dma.done %s760, 16
        $region64: #{tpu_custom_call.1} parent=55 // pred_fallthru
          _
      $region56: #{tpu_custom_call.1} parent=5 // pred_fallthru
        _
    $region6: #{tpu_custom_call.1} parent=1 // loop_footer
      %s24 = sadd.s32 1, %s20
    $region7: #{tpu_custom_call.1} parent=1 // loop_footer_branch
      %19 = sbr.rel target = $region3
    $region8: #{tpu_custom_call.1} parent=1 // loop_exit
      _
    %764 = vsyncpa [#allocation5], 1
    %s765 = scalar_lea.sflag [#allocation5], 1
    %766 = vsyncpa %s765, 1
    %767 = vsyncpa [#allocation6], 1
    %s768 = scalar_lea.sflag [#allocation6], 1
    %769 = vsyncpa %s768, 1
    %770 = vsyncpa [#allocation9], 1
    %s771 = scalar_lea.sflag [#allocation9], 1
    %772 = vsyncpa %s771, 1

</llo_original>
